<compile_context>
chip_gen: v7x
topology: tpu7x:2x2x1
jax: 0.10.0
libtpu: 0.0.40
codegen_flags: <defaults>
</compile_context>

<pallas_src>
import functools

import jax
import jax.numpy as jnp
from jax import lax
from jax.experimental import pallas as pl
from jax.experimental.pallas import tpu as pltpu


def _mha_kernel(*refs, has_mask):
    if has_mask:
        (x_ref, mask_ref, w_ref, b_ref, wo_ref, bo_ref,
         o_ref, acc_ref) = refs
    else:
        (x_ref, w_ref, b_ref, wo_ref, bo_ref, o_ref, acc_ref) = refs
        mask_ref = None

    h = pl.program_id(1)

    @pl.when(h == 0)
    def _init():
        acc_ref[...] = jnp.zeros_like(acc_ref)

    x = x_ref[...]                                    # (Bt, S, E) bf16

    def proj(i):
        # (Bt, S, E) @ (E, E) -> (Bt, S, E), f32 accumulate, then bf16 for MXU.
        y = lax.dot_general(
            x, w_ref[0, i],
            dimension_numbers=(((2,), (0,)), ((), ())),
            preferred_element_type=jnp.float32)
        return (y + b_ref[0, i]).astype(jnp.bfloat16)

    q = proj(0)
    k = proj(1)
    v = proj(2)

    # scores = q @ k^T (no 1/sqrt(d) scaling, per the module).  Contract the
    # last dims directly -- no explicit transpose / relayout of k.
    scores = lax.dot_general(
        q, k,
        dimension_numbers=(((2,), (2,)), ((0,), (0,))),
        preferred_element_type=jnp.float32)                        # (Bt, S, S) f32

    if has_mask:
        scores = jnp.where(mask_ref[...] == 0,
                           jnp.float32(-1000000000.0), scores)

    # softmax over the key axis, f32 throughout; EUP approx reciprocal.
    m = jnp.max(scores, axis=-1, keepdims=True)
    e = jnp.exp(scores - m)
    denom = jnp.sum(e, axis=-1, keepdims=True)
    p = e * pl.reciprocal(denom, approx=True)

    attn = lax.dot_general(
        p.astype(jnp.bfloat16), v,
        dimension_numbers=(((2,), (1,)), ((0,), (0,))),
        preferred_element_type=jnp.float32)                        # (Bt, S, E) f32

    # Fold this head's slice of the final Linear(e*h, e):
    # concat(heads) @ Wo == sum_h head_h @ Wo_slice_h
    acc_ref[...] += lax.dot_general(
        attn.astype(jnp.bfloat16), wo_ref[0],
        dimension_numbers=(((2,), (0,)), ((), ())),
        preferred_element_type=jnp.float32)

    @pl.when(h == pl.num_programs(1) - 1)
    def _finalize():
        o_ref[...] = (acc_ref[...] + bo_ref[0]).astype(o_ref.dtype)


def multi_head_attention(x, params, mask=None, *, batch_block=None):
    """x: (B, S, E) float32.  params = (wqkv, bqkv, wo, bo), see init_params."""
    wqkv, bqkv, wo, bo = params
    B, S, E = x.shape
    H = wqkv.shape[0]
    out_dtype = x.dtype

    Bt = B if batch_block is None else batch_block
    assert B % Bt == 0, "batch_block must divide batch"

    has_mask = mask is not None

    # bf16 for everything that feeds the MXU (halves DMA bytes & VMEM);
    # biases stay f32 (added to f32 accumulations).
    x_b = x.astype(jnp.bfloat16)
    wqkv_b = wqkv.astype(jnp.bfloat16)
    wo_b = wo.astype(jnp.bfloat16)

    inputs = [x_b]
    in_specs = [pl.BlockSpec((Bt, S, E), lambda b, h: (b, 0, 0))]     # x

    if has_mask:
        mask_i8 = (jnp.broadcast_to(mask, (B, S, S)) != 0).astype(jnp.int8)
        inputs.append(mask_i8)
        in_specs.append(pl.BlockSpec((Bt, S, S), lambda b, h: (b, 0, 0)))

    inputs += [wqkv_b, bqkv, wo_b, bo]
    in_specs += [
        pl.BlockSpec((1, 3, E, E), lambda b, h: (h, 0, 0, 0)),        # Wq/Wk/Wv[h]
        pl.BlockSpec((1, 3, 1, E), lambda b, h: (h, 0, 0, 0)),        # bq/bk/bv[h]
        pl.BlockSpec((1, E, E), lambda b, h: (h, 0, 0)),              # Wo slice h
        pl.BlockSpec((1, 1, E), lambda b, h: (0, 0, 0)),              # bo
    ]

    # Rough per-step working set -> explicit scoped-VMEM limit (with margin).
    bf16, f32 = 2, 4
    weight_bytes = 3 * E * E * bf16 + 3 * E * f32 + E * E * bf16 + E * f32
    io_bytes = Bt * S * E * (bf16 + f32)
    mask_bytes = Bt * S * S if has_mask else 0
    temp_bytes = (3 * Bt * S * E * bf16        # q / k / v (bf16)
                  + 2 * Bt * S * S * f32       # scores / exp
                  + 2 * Bt * S * E * f32)      # attn + accumulator
    est = 2 * (weight_bytes + io_bytes + mask_bytes) + temp_bytes
    vmem_limit = int(min(64 << 20, max(16 << 20, 2 * est)))

    kernel = functools.partial(_mha_kernel, has_mask=has_mask)

    return pl.pallas_call(
        kernel,
        out_shape=jax.ShapeDtypeStruct((B, S, E), out_dtype),
        grid_spec=pltpu.PrefetchScalarGridSpec(
            num_scalar_prefetch=0,
            grid=(B // Bt, H),
            in_specs=in_specs,
            out_specs=pl.BlockSpec((Bt, S, E), lambda b, h: (b, 0, 0)),
            scratch_shapes=[pltpu.VMEM((Bt, S, E), jnp.float32)],
        ),
        compiler_params=pltpu.CompilerParams(
            dimension_semantics=("parallel", "arbitrary"),
            vmem_limit_bytes=vmem_limit),
    )(*inputs)


def init_params(key, H, E):
    """Deterministic synthetic params.

    wqkv[h, i] (i=0,1,2 -> q,k,v) is the (E, E) projection matrix in `x @ W`
    convention (transpose of torch's nn.Linear.weight); bqkv[h, i] is the
    (1, E) bias.  wo[h] is the transpose of the h-th E-wide column slice of
    the torch Linear(e*h, e) weight; bo is its bias.
    """
    ks = jax.random.split(key, 4)
    scale = 0.1
    wqkv = scale * jax.random.normal(ks[0], (H, 3, E, E), jnp.float32)
    bqkv = scale * jax.random.normal(ks[1], (H, 3, 1, E), jnp.float32)
    wo = scale * jax.random.normal(ks[2], (H, E, E), jnp.float32)
    bo = scale * jax.random.normal(ks[3], (1, 1, E), jnp.float32)
    return (wqkv, bqkv, wo, bo)


def reference(x, params, mask=None):
    """Pure-JAX reference mirroring the PyTorch forward (same bf16-input /
    f32-accumulate matmul precision as the kernel)."""
    wqkv, bqkv, wo, bo = params
    H = wqkv.shape[0]
    bf = lambda a: a.astype(jnp.bfloat16)
    res = None
    for h in range(H):
        q = jnp.einsum("bse,ef->bsf", bf(x), bf(wqkv[h, 0]),
                       preferred_element_type=jnp.float32) + bqkv[h, 0]
        k = jnp.einsum("bse,ef->bsf", bf(x), bf(wqkv[h, 1]),
                       preferred_element_type=jnp.float32) + bqkv[h, 1]
        v = jnp.einsum("bse,ef->bsf", bf(x), bf(wqkv[h, 2]),
                       preferred_element_type=jnp.float32) + bqkv[h, 2]
        scores = jnp.einsum("bse,bte->bst", bf(q), bf(k),
                            preferred_element_type=jnp.float32)
        if mask is not None:
            scores = jnp.where(mask == 0, -1000000000.0, scores)
        p = jax.nn.softmax(scores, axis=-1)
        attn = jnp.einsum("bst,bte->bse", bf(p), bf(v),
                          preferred_element_type=jnp.float32)
        cur = jnp.einsum("bse,ef->bsf", bf(attn), bf(wo[h]),
                         preferred_element_type=jnp.float32)
        res = cur if res is None else res + cur
    return res + bo[0]


if __name__ == "__main__":
    B, S, E, H = 2, 8, 32, 4
    key = jax.random.PRNGKey(0)
    kx, kp = jax.random.split(key)
    x = jax.random.normal(kx, (B, S, E), jnp.float32)
    params = init_params(kp, H, E)

    # Path 1: mask=None (no mask DMA / no where in the kernel at all).
    out = jax.block_until_ready(multi_head_attention(x, params, mask=None))
    ref = reference(x, params, mask=None)
    assert out.shape == (B, S, E)
    assert jnp.allclose(out, ref, atol=2e-2, rtol=2e-2), (
        float(jnp.max(jnp.abs(out - ref))))

    # Path 2: real (causal) mask, carried as int8.
    mask = jnp.tril(jnp.ones((S, S), jnp.int32))
    out_m = jax.block_until_ready(multi_head_attention(x, params, mask=mask))
    ref_m = reference(x, params, mask=mask)
    assert jnp.allclose(out_m, ref_m, atol=2e-2, rtol=2e-2), (
        float(jnp.max(jnp.abs(out_m - ref_m))))

    print("KERNEL_OK")
</pallas_src>

<mosaic_0001>
module attributes {stable_mosaic.version = 11 : i64} {
  func.func @_mha_kernel(%arg0: i32, %arg1: i32, %arg2: memref<2x8x32xbf16, #tpu.memory_space<vmem>>, %arg3: memref<1x3x32x32xbf16, #tpu.memory_space<vmem>>, %arg4: memref<1x3x1x32xf32, #tpu.memory_space<vmem>>, %arg5: memref<1x32x32xbf16, #tpu.memory_space<vmem>>, %arg6: memref<1x1x32xf32, #tpu.memory_space<vmem>>, %arg7: memref<2x8x32xf32, #tpu.memory_space<vmem>>, %arg8: memref<2x8x32xf32, #tpu.memory_space<vmem>>) attributes {dimension_semantics = [#tpu.dimension_semantics<parallel>, #tpu.dimension_semantics<arbitrary>], iteration_bounds = array<i64: 1, 4>, scalar_prefetch = 0 : i64, scratch_operands = 1 : i64, tpu.core_type = #tpu.core_type<tc>, window_params = [{transform_indices = @transform_0, window_bounds = array<i64: 2, 8, 32>}, {transform_indices = @transform_1, window_bounds = array<i64: 1, 3, 32, 32>}, {transform_indices = @transform_2, window_bounds = array<i64: 1, 3, 1, 32>}, {transform_indices = @transform_3, window_bounds = array<i64: 1, 32, 32>}, {pipeline_mode = #tpu.pipeline_mode<synchronous>, transform_indices = @transform_4, window_bounds = array<i64: 1, 1, 32>}, {transform_indices = @transform_5, window_bounds = array<i64: 2, 8, 32>}]} {
    %c0_i32 = arith.constant 0 : i32
    %0 = arith.cmpi eq, %arg1, %c0_i32 : i32
    %1 = arith.extui %0 : i1 to i32
    %c0_i32_0 = arith.constant 0 : i32
    %2 = arith.cmpi ne, %1, %c0_i32_0 : i32
    scf.if %2 {
      %cst_42 = arith.constant 0.000000e+00 : f32
      %54 = vector.broadcast %cst_42 : f32 to vector<2x8x32xf32>
      %c0_43 = arith.constant 0 : index
      %c0_44 = arith.constant 0 : index
      %c0_45 = arith.constant 0 : index
      %55 = vector.load %arg8[%c0_43, %c0_44, %c0_45] : memref<2x8x32xf32, #tpu.memory_space<vmem>>, vector<2x8x32xf32>
      tpu.vector_store %arg8[%c0_43, %c0_44, %c0_45], %54 {strides = array<i32>} : memref<2x8x32xf32, #tpu.memory_space<vmem>>, vector<2x8x32xf32>,
    } else {
    }
    %c0 = arith.constant 0 : index
    %c0_1 = arith.constant 0 : index
    %c0_2 = arith.constant 0 : index
    %3 = vector.load %arg2[%c0, %c0_1, %c0_2] : memref<2x8x32xbf16, #tpu.memory_space<vmem>>, vector<2x8x32xbf16>
    %c0_3 = arith.constant 0 : index
    %c0_4 = arith.constant 0 : index
    %c0_5 = arith.constant 0 : index
    %c0_6 = arith.constant 0 : index
    %4 = vector.load %arg3[%c0_3, %c0_4, %c0_5, %c0_6] : memref<1x3x32x32xbf16, #tpu.memory_space<vmem>>, vector<1x1x32x32xbf16>
    %5 = vector.shape_cast %4 : vector<1x1x32x32xbf16> to vector<32x32xbf16>
    %cst = arith.constant dense<0.000000e+00> : vector<2x8x32xf32>
    %6 = tpu.matmul %3, %5, %cst {dimension_numbers = #tpu.dot_dimension_numbers<[2], [0], [0, 1], [1], [0, 0, 0, 1, 1, 1], [], []>} : vector<2x8x32xbf16>, vector<32x32xbf16>, vector<2x8x32xf32> -> vector<2x8x32xf32>
    %c0_7 = arith.constant 0 : index
    %c0_8 = arith.constant 0 : index
    %c0_9 = arith.constant 0 : index
    %c0_10 = arith.constant 0 : index
    %7 = vector.load %arg4[%c0_7, %c0_8, %c0_9, %c0_10] : memref<1x3x1x32xf32, #tpu.memory_space<vmem>>, vector<1x1x1x32xf32>
    %8 = vector.shape_cast %7 : vector<1x1x1x32xf32> to vector<1x32xf32>
    %9 = vector.shape_cast %8 : vector<1x32xf32> to vector<1x1x32xf32>
    %10 = vector.broadcast %9 : vector<1x1x32xf32> to vector<2x8x32xf32>
    %11 = arith.addf %6, %10 : vector<2x8x32xf32>
    %12 = arith.truncf %11 : vector<2x8x32xf32> to vector<2x8x32xbf16>
    %c0_11 = arith.constant 0 : index
    %c1 = arith.constant 1 : index
    %c0_12 = arith.constant 0 : index
    %c0_13 = arith.constant 0 : index
    %13 = vector.load %arg3[%c0_11, %c1, %c0_12, %c0_13] : memref<1x3x32x32xbf16, #tpu.memory_space<vmem>>, vector<1x1x32x32xbf16>
    %14 = vector.shape_cast %13 : vector<1x1x32x32xbf16> to vector<32x32xbf16>
    %cst_14 = arith.constant dense<0.000000e+00> : vector<2x8x32xf32>
    %15 = tpu.matmul %3, %14, %cst_14 {dimension_numbers = #tpu.dot_dimension_numbers<[2], [0], [0, 1], [1], [0, 0, 0, 1, 1, 1], [], []>} : vector<2x8x32xbf16>, vector<32x32xbf16>, vector<2x8x32xf32> -> vector<2x8x32xf32>
    %c0_15 = arith.constant 0 : index
    %c1_16 = arith.constant 1 : index
    %c0_17 = arith.constant 0 : index
    %c0_18 = arith.constant 0 : index
    %16 = vector.load %arg4[%c0_15, %c1_16, %c0_17, %c0_18] : memref<1x3x1x32xf32, #tpu.memory_space<vmem>>, vector<1x1x1x32xf32>
    %17 = vector.shape_cast %16 : vector<1x1x1x32xf32> to vector<1x32xf32>
    %18 = vector.shape_cast %17 : vector<1x32xf32> to vector<1x1x32xf32>
    %19 = vector.broadcast %18 : vector<1x1x32xf32> to vector<2x8x32xf32>
    %20 = arith.addf %15, %19 : vector<2x8x32xf32>
    %21 = arith.truncf %20 : vector<2x8x32xf32> to vector<2x8x32xbf16>
    %c0_19 = arith.constant 0 : index
    %c2 = arith.constant 2 : index
    %c0_20 = arith.constant 0 : index
    %c0_21 = arith.constant 0 : index
    %22 = vector.load %arg3[%c0_19, %c2, %c0_20, %c0_21] : memref<1x3x32x32xbf16, #tpu.memory_space<vmem>>, vector<1x1x32x32xbf16>
    %23 = vector.shape_cast %22 : vector<1x1x32x32xbf16> to vector<32x32xbf16>
    %cst_22 = arith.constant dense<0.000000e+00> : vector<2x8x32xf32>
    %24 = tpu.matmul %3, %23, %cst_22 {dimension_numbers = #tpu.dot_dimension_numbers<[2], [0], [0, 1], [1], [0, 0, 0, 1, 1, 1], [], []>} : vector<2x8x32xbf16>, vector<32x32xbf16>, vector<2x8x32xf32> -> vector<2x8x32xf32>
    %c0_23 = arith.constant 0 : index
    %c2_24 = arith.constant 2 : index
    %c0_25 = arith.constant 0 : index
    %c0_26 = arith.constant 0 : index
    %25 = vector.load %arg4[%c0_23, %c2_24, %c0_25, %c0_26] : memref<1x3x1x32xf32, #tpu.memory_space<vmem>>, vector<1x1x1x32xf32>
    %26 = vector.shape_cast %25 : vector<1x1x1x32xf32> to vector<1x32xf32>
    %27 = vector.shape_cast %26 : vector<1x32xf32> to vector<1x1x32xf32>
    %28 = vector.broadcast %27 : vector<1x1x32xf32> to vector<2x8x32xf32>
    %29 = arith.addf %24, %28 : vector<2x8x32xf32>
    %30 = arith.truncf %29 : vector<2x8x32xf32> to vector<2x8x32xbf16>
    %cst_27 = arith.constant dense<0.000000e+00> : vector<2x8x8xf32>
    %31 = tpu.matmul %12, %21, %cst_27 {dimension_numbers = #tpu.dot_dimension_numbers<[2], [2], [1], [1], [0, 0, 0, 1, 1, 1], [0], [0]>} : vector<2x8x32xbf16>, vector<2x8x32xbf16>, vector<2x8x8xf32> -> vector<2x8x8xf32>
    %cst_28 = arith.constant dense<0xFF800000> : vector<2x8xf32>
    %32 = vector.multi_reduction <maximumf>, %31, %cst_28 [2] : vector<2x8x8xf32> to vector<2x8xf32>
    %33 = vector.shape_cast %32 : vector<2x8xf32> to vector<2x8x1xf32>
    %34 = vector.broadcast %33 : vector<2x8x1xf32> to vector<2x8x8xf32>
    %35 = arith.subf %31, %34 : vector<2x8x8xf32>
    %36 = math.exp %35 : vector<2x8x8xf32>
    %cst_29 = arith.constant dense<0.000000e+00> : vector<2x8xf32>
    %37 = vector.multi_reduction <add>, %36, %cst_29 [2] : vector<2x8x8xf32> to vector<2x8xf32>
    %38 = vector.shape_cast %37 : vector<2x8xf32> to vector<2x8x1xf32>
    %39 = tpu.reciprocal %38 {approx = true} : vector<2x8x1xf32> -> vector<2x8x1xf32>
    %40 = vector.broadcast %39 : vector<2x8x1xf32> to vector<2x8x8xf32>
    %41 = arith.mulf %36, %40 : vector<2x8x8xf32>
    %42 = arith.truncf %41 : vector<2x8x8xf32> to vector<2x8x8xbf16>
    %cst_30 = arith.constant dense<0.000000e+00> : vector<2x8x32xf32>
    %43 = tpu.matmul %42, %30, %cst_30 {dimension_numbers = #tpu.dot_dimension_numbers<[2], [1], [1], [2], [0, 0, 0, 1, 1, 2], [0], [0]>} : vector<2x8x8xbf16>, vector<2x8x32xbf16>, vector<2x8x32xf32> -> vector<2x8x32xf32>
    %c0_31 = arith.constant 0 : index
    %c0_32 = arith.constant 0 : index
    %c0_33 = arith.constant 0 : index
    %44 = vector.load %arg8[%c0_31, %c0_32, %c0_33] : memref<2x8x32xf32, #tpu.memory_space<vmem>>, vector<2x8x32xf32>
    %45 = arith.truncf %43 : vector<2x8x32xf32> to vector<2x8x32xbf16>
    %c0_34 = arith.constant 0 : index
    %c0_35 = arith.constant 0 : index
    %c0_36 = arith.constant 0 : index
    %46 = vector.load %arg5[%c0_34, %c0_35, %c0_36] : memref<1x32x32xbf16, #tpu.memory_space<vmem>>, vector<1x32x32xbf16>
    %47 = vector.shape_cast %46 : vector<1x32x32xbf16> to vector<32x32xbf16>
    %cst_37 = arith.constant dense<0.000000e+00> : vector<2x8x32xf32>
    %48 = tpu.matmul %45, %47, %cst_37 {dimension_numbers = #tpu.dot_dimension_numbers<[2], [0], [0, 1], [1], [0, 0, 0, 1, 1, 1], [], []>} : vector<2x8x32xbf16>, vector<32x32xbf16>, vector<2x8x32xf32> -> vector<2x8x32xf32>
    %49 = arith.addf %44, %48 : vector<2x8x32xf32>
    %c0_38 = arith.constant 0 : index
    %c0_39 = arith.constant 0 : index
    %c0_40 = arith.constant 0 : index
    %50 = vector.load %arg8[%c0_38, %c0_39, %c0_40] : memref<2x8x32xf32, #tpu.memory_space<vmem>>, vector<2x8x32xf32>
    tpu.vector_store %arg8[%c0_38, %c0_39, %c0_40], %49 {strides = array<i32>} : memref<2x8x32xf32, #tpu.memory_space<vmem>>, vector<2x8x32xf32>,
    %c3_i32 = arith.constant 3 : i32
    %51 = arith.cmpi eq, %arg1, %c3_i32 : i32
    %52 = arith.extui %51 : i1 to i32
    %c0_i32_41 = arith.constant 0 : i32
    %53 = arith.cmpi ne, %52, %c0_i32_41 : i32
    scf.if %53 {
      %c0_42 = arith.constant 0 : index
      %c0_43 = arith.constant 0 : index
      %c0_44 = arith.constant 0 : index
      %54 = vector.load %arg8[%c0_42, %c0_43, %c0_44] : memref<2x8x32xf32, #tpu.memory_space<vmem>>, vector<2x8x32xf32>
      %c0_45 = arith.constant 0 : index
      %c0_46 = arith.constant 0 : index
      %c0_47 = arith.constant 0 : index
      %55 = vector.load %arg6[%c0_45, %c0_46, %c0_47] : memref<1x1x32xf32, #tpu.memory_space<vmem>>, vector<1x1x32xf32>
      %56 = vector.shape_cast %55 : vector<1x1x32xf32> to vector<1x32xf32>
      %57 = vector.shape_cast %56 : vector<1x32xf32> to vector<1x1x32xf32>
      %58 = vector.broadcast %57 : vector<1x1x32xf32> to vector<2x8x32xf32>
      %59 = arith.addf %54, %58 : vector<2x8x32xf32>
      %c0_48 = arith.constant 0 : index
      %c0_49 = arith.constant 0 : index
      %c0_50 = arith.constant 0 : index
      %60 = vector.load %arg7[%c0_48, %c0_49, %c0_50] : memref<2x8x32xf32, #tpu.memory_space<vmem>>, vector<2x8x32xf32>
      tpu.vector_store %arg7[%c0_48, %c0_49, %c0_50], %59 {strides = array<i32>} : memref<2x8x32xf32, #tpu.memory_space<vmem>>, vector<2x8x32xf32>,
    } else {
    }
    return
  }
  func.func @transform_0(%arg0: i32, %arg1: i32) -> (i32, i32, i32) {
    %c0_i32 = arith.constant 0 : i32
    %c0_i32_0 = arith.constant 0 : i32
    %c0_i32_1 = arith.constant 0 : i32
    return %arg0, %c0_i32, %c0_i32_0 : i32, i32, i32
  }
  func.func @transform_1(%arg0: i32, %arg1: i32) -> (i32, i32, i32, i32) {
    %c0_i32 = arith.constant 0 : i32
    %c0_i32_0 = arith.constant 0 : i32
    %c0_i32_1 = arith.constant 0 : i32
    %c0_i32_2 = arith.constant 0 : i32
    return %arg1, %c0_i32, %c0_i32_0, %c0_i32_1 : i32, i32, i32, i32
  }
  func.func @transform_2(%arg0: i32, %arg1: i32) -> (i32, i32, i32, i32) {
    %c0_i32 = arith.constant 0 : i32
    %c0_i32_0 = arith.constant 0 : i32
    %c0_i32_1 = arith.constant 0 : i32
    %c0_i32_2 = arith.constant 0 : i32
    return %arg1, %c0_i32, %c0_i32_0, %c0_i32_1 : i32, i32, i32, i32
  }
  func.func @transform_3(%arg0: i32, %arg1: i32) -> (i32, i32, i32) {
    %c0_i32 = arith.constant 0 : i32
    %c0_i32_0 = arith.constant 0 : i32
    %c0_i32_1 = arith.constant 0 : i32
    return %arg1, %c0_i32, %c0_i32_0 : i32, i32, i32
  }
  func.func @transform_4(%arg0: i32, %arg1: i32) -> (i32, i32, i32) {
    %c0_i32 = arith.constant 0 : i32
    %c0_i32_0 = arith.constant 0 : i32
    %c0_i32_1 = arith.constant 0 : i32
    %c0_i32_2 = arith.constant 0 : i32
    return %c0_i32, %c0_i32_0, %c0_i32_1 : i32, i32, i32
  }
  func.func @transform_5(%arg0: i32, %arg1: i32) -> (i32, i32, i32) {
    %c0_i32 = arith.constant 0 : i32
    %c0_i32_0 = arith.constant 0 : i32
    %c0_i32_1 = arith.constant 0 : i32
    return %arg0, %c0_i32, %c0_i32_0 : i32, i32, i32
  }
}

</mosaic_0001>

<llo_original>
// kernel: tpu_custom_call.1
$region0: #{tpu_custom_call.1}
  #allocation0 [shape = 'u32[]', space=smem, size = 0x4, offset = 0x4, fixed_abs, tag = 'smem constant byte address 0x4 - core index']
  #allocation1 [shape = 'u32[144,128]{1,0:T(1,128)}', space=vmem, size = 0x12000, scoped, tag = 'internal scratch']
  #allocation2 [shape = 'f32[2,8,32]{2,1,0:T(8,128)}', space=vmem, size = 0x2000, scoped, tag = 'scratch operand']
  %s0 = inlined_call_operand.hbm [shape: bf16[2,8,32], index: 0, kind: input, shape index: {}]
  %s1 = inlined_call_operand.hbm [shape: bf16[4,3,32,32], index: 1, kind: input, shape index: {}]
  %s2 = inlined_call_operand.hbm [shape: f32[4,3,1,32], index: 2, kind: input, shape index: {}]
  %s3 = inlined_call_operand.hbm [shape: bf16[4,32,32], index: 3, kind: input, shape index: {}]
  %s4 = inlined_call_operand.vmem [shape: f32[1,1,32], index: 4, kind: input, shape index: {}]
  %s5 = inlined_call_operand.hbm [shape: f32[2,8,32], index: 5, kind: output, shape index: {}]
  %s6 = sld [smem:[#allocation0]]
  $region77: #{tpu_custom_call.1} parent=0
    _
  %s8 = ssub.s32 1, %s6
  %s9 = scalar_select 0, %s8, %s6
  $region1: #{tpu_custom_call.1} parent=0
    #allocation3 [shape = 'u8[4096]{0}', space=vmem, size = 0x1000, scoped, tag = 'input window, operand 0, single buffered']
    #allocation4 [shape = 's32[2]{0}', space=sflag, size = 0x8, scoped, tag = 'scoped memory for tpu_custom_call.1']
    #allocation5 [shape = 's32[2]{0}', space=sflag, size = 0x8, scoped, tag = 'scoped memory for tpu_custom_call.1']
    #allocation6 [shape = 'u8[49152]{0}', space=vmem, size = 0xc000, scoped, tag = 'input window, operand 1']
    #allocation7 [shape = 's32[2]{0}', space=sflag, size = 0x8, scoped, tag = 'scoped memory for tpu_custom_call.1']
    #allocation8 [shape = 'u8[3072]{0}', space=vmem, size = 0xc00, scoped, tag = 'input window, operand 2']
    #allocation9 [shape = 'u8[16384]{0}', space=vmem, size = 0x4000, scoped, tag = 'input window, operand 3']
    #allocation10 [shape = 's32[2]{0}', space=sflag, size = 0x8, scoped, tag = 'scoped memory for tpu_custom_call.1']
    #allocation11 [shape = 'u8[8192]{0}', space=vmem, size = 0x2000, scoped, tag = 'output window, operand 0, single buffered']
    %10 = vsyncpa [#allocation4], 0
    %11 = vsyncpa [#allocation7], 0
    %s12 = scalar_lea.sflag [#allocation7], 1
    %13 = vsyncpa %s12, 0
    %14 = vsyncpa [#allocation10], 0
    %s15 = scalar_lea.sflag [#allocation10], 1
    %16 = vsyncpa %s15, 0
    %17 = vsyncpa [#allocation5], 0
    loop: start=0, step=1, limit=6
    $region2: #{tpu_custom_call.1} parent=1 // loop_pre_header
      _
    $region3: #{tpu_custom_call.1} parent=1 // loop_header
      %s19 = sphi 0, %s23
      %p20 = scmp.ge.s32.totalorder %s19, 6
      %s26 = sphi 0, %s38
      %s27 = sphi 0, %s34
      %s28 = sphi 0, %s26
      %s29 = sphi 0, %s27
      %s30 = sphi 0, %s28
      %s31 = sphi 0, %s29
      %s41 = sphi 0, %s43
      %s44 = sphi 0, %s41
      %s45 = sphi 0, %s44
      %s61 = sphi 0, %s45
      %s67 = sphi 0, %s69
      %s70 = sphi 0, %s67
      %s71 = sphi 0, %s70
      %s87 = sphi 0, %s71
      %s93 = sphi 0, %s95
      %s96 = sphi 0, %s93
      %s97 = sphi 0, %s96
      %s113 = sphi 0, %s97
      %s119 = sphi 0, %s121
      %s122 = sphi 0, %s119
      %s123 = sphi 0, %s122
      %s139 = sphi 0, %s123
      %s143 = sphi 0, %s143
      %s145 = sphi 0, %s143
      %s146 = sphi 0, %s145
      %s160 = sphi 0, %s146
      %s166 = sphi 0, %s168
      %s169 = sphi 0, %s166
      %s170 = sphi 0, %s169
      %s186 = sphi 0, %s170
    $region4: #{tpu_custom_call.1} parent=1 // loop_header_branch
      %22 = sbr.rel (%p20) target = $region8
    $region5: #{tpu_custom_call.1} parent=1 // loop_body
      %s24 = ssub.s32 %s19, 1
      %s25 = ssub.s32 %s19, 2
      %s32 = sadd.s32 1, %s27
      %p33 = scmp.ge.s32.totalorder %s32, 4
      %s34 = scalar_select %p33, 0, %s32
      %s35 = sadd.s32 1, %s26
      %s36 = scalar_select %p33, %s35, %s26
      %p37 = scmp.ge.s32.totalorder %s36, 1
      %s38 = scalar_select %p37, 0, %s36
      %s39 = ssub.s32 %s26, %s38
      %p40 = scmp.eq.s32.totalorder %s39, 0
      %s42 = sadd.s32 %s41, 1
      %s43 = scalar_select %p40, %s41, %s42
      %p46 = pneg %p40
      %p47 = scmp.eq.s32.totalorder %s19, 3
      %p48 = por %p46, %p47
      %p49 = scmp.ne.s32.totalorder %s41, %s44
      %p50 = scmp.eq.s32.totalorder %s19, 0
      %p51 = por %p49, %p50
      %p52 = scmp.ne.s32.totalorder %s41, %s44
      %p53 = scmp.eq.s32.totalorder %s24, 3
      %p54 = por %p52, %p53
      %p55 = scmp.ne.s32.totalorder %s44, %s45
      %p56 = scmp.eq.s32.totalorder %s24, 0
      %p57 = por %p55, %p56
      %p58 = scmp.ne.s32.totalorder %s44, %s45
      %p59 = scmp.eq.s32.totalorder %s25, 3
      %p60 = por %p58, %p59
      %p62 = scmp.ne.s32.totalorder %s45, %s61
      %p63 = scmp.eq.s32.totalorder %s25, 0
      %p64 = por %p62, %p63
      %s65 = ssub.s32 %s27, %s34
      %p66 = scmp.eq.s32.totalorder %s65, 0
      %s68 = sadd.s32 %s67, 1
      %s69 = scalar_select %p66, %s67, %s68
      %p72 = pneg %p66
      %p73 = scmp.eq.s32.totalorder %s19, 3
      %p74 = por %p72, %p73
      %p75 = scmp.ne.s32.totalorder %s67, %s70
      %p76 = scmp.eq.s32.totalorder %s19, 0
      %p77 = por %p75, %p76
      %p78 = scmp.ne.s32.totalorder %s67, %s70
      %p79 = scmp.eq.s32.totalorder %s24, 3
      %p80 = por %p78, %p79
      %p81 = scmp.ne.s32.totalorder %s70, %s71
      %p82 = scmp.eq.s32.totalorder %s24, 0
      %p83 = por %p81, %p82
      %p84 = scmp.ne.s32.totalorder %s70, %s71
      %p85 = scmp.eq.s32.totalorder %s25, 3
      %p86 = por %p84, %p85
      %p88 = scmp.ne.s32.totalorder %s71, %s87
      %p89 = scmp.eq.s32.totalorder %s25, 0
      %p90 = por %p88, %p89
      %s91 = ssub.s32 %s27, %s34
      %p92 = scmp.eq.s32.totalorder %s91, 0
      %s94 = sadd.s32 %s93, 1
      %s95 = scalar_select %p92, %s93, %s94
      %p98 = pneg %p92
      %p99 = scmp.eq.s32.totalorder %s19, 3
      %p100 = por %p98, %p99
      %p101 = scmp.ne.s32.totalorder %s93, %s96
      %p102 = scmp.eq.s32.totalorder %s19, 0
      %p103 = por %p101, %p102
      %p104 = scmp.ne.s32.totalorder %s93, %s96
      %p105 = scmp.eq.s32.totalorder %s24, 3
      %p106 = por %p104, %p105
      %p107 = scmp.ne.s32.totalorder %s96, %s97
      %p108 = scmp.eq.s32.totalorder %s24, 0
      %p109 = por %p107, %p108
      %p110 = scmp.ne.s32.totalorder %s96, %s97
      %p111 = scmp.eq.s32.totalorder %s25, 3
      %p112 = por %p110, %p111
      %p114 = scmp.ne.s32.totalorder %s97, %s113
      %p115 = scmp.eq.s32.totalorder %s25, 0
      %p116 = por %p114, %p115
      %s117 = ssub.s32 %s27, %s34
      %p118 = scmp.eq.s32.totalorder %s117, 0
      %s120 = sadd.s32 %s119, 1
      %s121 = scalar_select %p118, %s119, %s120
      %p124 = pneg %p118
      %p125 = scmp.eq.s32.totalorder %s19, 3
      %p126 = por %p124, %p125
      %p127 = scmp.ne.s32.totalorder %s119, %s122
      %p128 = scmp.eq.s32.totalorder %s19, 0
      %p129 = por %p127, %p128
      %p130 = scmp.ne.s32.totalorder %s119, %s122
      %p131 = scmp.eq.s32.totalorder %s24, 3
      %p132 = por %p130, %p131
      %p133 = scmp.ne.s32.totalorder %s122, %s123
      %p134 = scmp.eq.s32.totalorder %s24, 0
      %p135 = por %p133, %p134
      %p136 = scmp.ne.s32.totalorder %s122, %s123
      %p137 = scmp.eq.s32.totalorder %s25, 3
      %p138 = por %p136, %p137
      %p140 = scmp.ne.s32.totalorder %s123, %s139
      %p141 = scmp.eq.s32.totalorder %s25, 0
      %p142 = por %p140, %p141
      %s144 = sadd.s32 %s143, 1
      %p147 = scmp.eq.s32.totalorder %s19, 3
      %p148 = scmp.ne.s32.totalorder %s143, %s145
      %p149 = scmp.eq.s32.totalorder %s19, 0
      %p150 = por %p148, %p149
      %p151 = scmp.ne.s32.totalorder %s143, %s145
      %p152 = scmp.eq.s32.totalorder %s24, 3
      %p153 = por %p151, %p152
      %p154 = scmp.ne.s32.totalorder %s145, %s146
      %p155 = scmp.eq.s32.totalorder %s24, 0
      %p156 = por %p154, %p155
      %p157 = scmp.ne.s32.totalorder %s145, %s146
      %p158 = scmp.eq.s32.totalorder %s25, 3
      %p159 = por %p157, %p158
      %p161 = scmp.ne.s32.totalorder %s146, %s160
      %p162 = scmp.eq.s32.totalorder %s25, 0
      %p163 = por %p161, %p162
      %s164 = ssub.s32 %s26, %s38
      %p165 = scmp.eq.s32.totalorder %s164, 0
      %s167 = sadd.s32 %s166, 1
      %s168 = scalar_select %p165, %s166, %s167
      %p171 = pneg %p165
      %p172 = scmp.eq.s32.totalorder %s19, 3
      %p173 = por %p171, %p172
      %p174 = scmp.ne.s32.totalorder %s166, %s169
      %p175 = scmp.eq.s32.totalorder %s19, 0
      %p176 = por %p174, %p175
      %p177 = scmp.ne.s32.totalorder %s166, %s169
      %p178 = scmp.eq.s32.totalorder %s24, 3
      %p179 = por %p177, %p178
      %p180 = scmp.ne.s32.totalorder %s169, %s170
      %p181 = scmp.eq.s32.totalorder %s24, 0
      %p182 = por %p180, %p181
      %p183 = scmp.ne.s32.totalorder %s169, %s170
      %p184 = scmp.eq.s32.totalorder %s25, 3
      %p185 = por %p183, %p184
      %p187 = scmp.ne.s32.totalorder %s170, %s186
      %p188 = scmp.eq.s32.totalorder %s25, 0
      %p189 = por %p187, %p188
      %p190 = scmp.le.s32.totalorder 1, %s19
      %p191 = scmp.lt.s32.totalorder %s19, 5
      %p192 = pnand %p190, %p191
      %p193 = pneg %p192
      // Predicated region
      $region9: #{tpu_custom_call.1} parent=5 // pred_check
        _
      $region10: #{tpu_custom_call.1} parent=5 // pred_check_branch
        %195 = sbr.rel (%p192) target = $region12
      $region11: #{tpu_custom_call.1} parent=5 // pred_region
        %s196 = ssub.s32 %s19, 1
        // Predicated region
        $region13: #{tpu_custom_call.1} parent=11 // pred_check
          %p197 = pneg %p57
        $region14: #{tpu_custom_call.1} parent=11 // pred_check_branch
          %199 = sbr.rel (%p197) target = $region16
        $region15: #{tpu_custom_call.1} parent=11 // pred_region
          %s200 = smul.u32 2, %s28
          %s202 = ssub.s32 128, 128
          %203 = vsyncadd [#allocation4], %s202
          %s204 = smul.addr %s200, 64
          %s205 = scalar_lea.hbm %s0, %s204
          %s206 = sshll.u32 [#allocation3], 4
          %s207 = int_to_ptr.vmem [resolvable:$true] %s206
          %212 = dma.hbm_to_vmem [thread:$0]  %s205, 128, %s207, [#allocation4], 64, 64, 4
        $region16: #{tpu_custom_call.1} parent=11 // pred_fallthru
          _
        // Predicated region
        $region17: #{tpu_custom_call.1} parent=11 // pred_check
          %p213 = pneg %p156
        $region18: #{tpu_custom_call.1} parent=11 // pred_check_branch
          %215 = sbr.rel (%p213) target = $region20
        $region19: #{tpu_custom_call.1} parent=11 // pred_region
          _
        $region20: #{tpu_custom_call.1} parent=11 // pred_fallthru
          _
      $region12: #{tpu_custom_call.1} parent=5 // pred_fallthru
        _
      %p216 = scmp.lt.s32.totalorder %s19, 4
      // Predicated region
      $region21: #{tpu_custom_call.1} parent=5 // pred_check
        %p217 = pneg %p216
      $region22: #{tpu_custom_call.1} parent=5 // pred_check_branch
        %219 = sbr.rel (%p217) target = $region24
      $region23: #{tpu_custom_call.1} parent=5 // pred_region
        // Predicated region
        $region25: #{tpu_custom_call.1} parent=23 // pred_check
          %p220 = pneg %p77
        $region26: #{tpu_custom_call.1} parent=23 // pred_check_branch
          %222 = sbr.rel (%p220) target = $region28
        $region27: #{tpu_custom_call.1} parent=23 // pred_region
          %s223 = sand.u32 %s19, 1
          %s224 = scalar_lea.sflag [#allocation7], %s223
          %s225 = sand.u32 %s67, 1
          %s226 = smul.addr %s225, 48
          %s227 = scalar_lea.vmem [#allocation6], %s226
          %s229 = ssub.s32 768, 768
          %230 = vsyncadd %s224, %s229
          %s231 = smul.addr %s27, 12
          %s232 = smul.addr %s231, 64
          %s233 = scalar_lea.hbm %s1, %s232
          %s234 = sshll.u32 %s227, 4
          %s235 = int_to_ptr.vmem [resolvable:$true] %s234
          %240 = dma.hbm_to_vmem [thread:$0]  %s233, 768, %s235, %s224, 64, 64, 4
        $region28: #{tpu_custom_call.1} parent=23 // pred_fallthru
          _
        // Predicated region
        $region29: #{tpu_custom_call.1} parent=23 // pred_check
          %p241 = pneg %p103
        $region30: #{tpu_custom_call.1} parent=23 // pred_check_branch
          %243 = sbr.rel (%p241) target = $region32
        $region31: #{tpu_custom_call.1} parent=23 // pred_region
          %s244 = sand.u32 %s19, 1
          %s245 = scalar_lea.sflag [#allocation7], %s244
          %s246 = sand.u32 %s93, 1
          %s247 = smul.addr %s246, 3
          %s248 = scalar_lea.vmem [#allocation8], %s247
          %s250 = ssub.s32 48, 48
          %251 = vsyncadd %s245, %s250
          %s252 = smul.addr %s27, 3
          %s253 = smul.addr %s252, 16
          %s254 = scalar_lea.hbm %s2, %s253
          %s255 = sshll.u32 %s248, 4
          %s256 = int_to_ptr.vmem [resolvable:$true] %s255
          %261 = dma.hbm_to_vmem [thread:$0]  %s254, 48, %s256, %s245, 16, 16, 1
        $region32: #{tpu_custom_call.1} parent=23 // pred_fallthru
          _
        // Predicated region
        $region33: #{tpu_custom_call.1} parent=23 // pred_check
          %p262 = pneg %p129
        $region34: #{tpu_custom_call.1} parent=23 // pred_check_branch
          %264 = sbr.rel (%p262) target = $region36
        $region35: #{tpu_custom_call.1} parent=23 // pred_region
          %s265 = sand.u32 %s119, 1
          %s266 = scalar_lea.sflag [#allocation10], %s265
          %s267 = sand.u32 %s119, 1
          %s268 = smul.addr %s267, 16
          %s269 = scalar_lea.vmem [#allocation9], %s268
          %s271 = ssub.s32 256, 256
          %272 = vsyncadd %s266, %s271
          %s273 = smul.addr %s27, 4
          %s274 = smul.addr %s273, 64
          %s275 = scalar_lea.hbm %s3, %s274
          %s276 = sshll.u32 %s269, 4
          %s277 = int_to_ptr.vmem [resolvable:$true] %s276
          %282 = dma.hbm_to_vmem [thread:$0]  %s275, 256, %s277, %s266, 64, 64, 4
        $region36: #{tpu_custom_call.1} parent=23 // pred_fallthru
          _
      $region24: #{tpu_custom_call.1} parent=5 // pred_fallthru
        _
      %p283 = scmp.le.s32.totalorder 1, %s19
      %p284 = scmp.lt.s32.totalorder %s19, 5
      %p285 = pnand %p283, %p284
      %p286 = pneg %p285
      // Predicated region
      $region37: #{tpu_custom_call.1} parent=5 // pred_check
        _
      $region38: #{tpu_custom_call.1} parent=5 // pred_check_branch
        %288 = sbr.rel (%p285) target = $region40
      $region39: #{tpu_custom_call.1} parent=5 // pred_region
        %s289 = ssub.s32 %s19, 1
        // Predicated region
        $region41: #{tpu_custom_call.1} parent=39 // pred_check
          %p290 = pneg %p57
        $region42: #{tpu_custom_call.1} parent=39 // pred_check_branch
          %292 = sbr.rel (%p290) target = $region44
        $region43: #{tpu_custom_call.1} parent=39 // pred_region
          %293 = dma.done [#allocation4], 128
        $region44: #{tpu_custom_call.1} parent=39 // pred_fallthru
          _
        %s294 = sand.u32 %s24, 1
        %s295 = scalar_lea.sflag [#allocation7], %s294
        %s296 = sand.u32 %s70, 1
        %s297 = smul.addr %s296, 48
        %s298 = scalar_lea.vmem [#allocation6], %s297
        // Predicated region
        $region45: #{tpu_custom_call.1} parent=39 // pred_check
          %p299 = pneg %p83
        $region46: #{tpu_custom_call.1} parent=39 // pred_check_branch
          %301 = sbr.rel (%p299) target = $region48
        $region47: #{tpu_custom_call.1} parent=39 // pred_region
          %302 = dma.done %s295, 768
        $region48: #{tpu_custom_call.1} parent=39 // pred_fallthru
          _
        %s303 = sand.u32 %s24, 1
        %s304 = scalar_lea.sflag [#allocation7], %s303
        %s305 = sand.u32 %s96, 1
        %s306 = smul.addr %s305, 3
        %s307 = scalar_lea.vmem [#allocation8], %s306
        // Predicated region
        $region49: #{tpu_custom_call.1} parent=39 // pred_check
          %p308 = pneg %p109
        $region50: #{tpu_custom_call.1} parent=39 // pred_check_branch
          %310 = sbr.rel (%p308) target = $region52
        $region51: #{tpu_custom_call.1} parent=39 // pred_region
          %311 = dma.done %s304, 48
        $region52: #{tpu_custom_call.1} parent=39 // pred_fallthru
          _
        %s312 = sand.u32 %s122, 1
        %s313 = scalar_lea.sflag [#allocation10], %s312
        %s314 = sand.u32 %s122, 1
        %s315 = smul.addr %s314, 16
        %s316 = scalar_lea.vmem [#allocation9], %s315
        // Predicated region
        $region53: #{tpu_custom_call.1} parent=39 // pred_check
          %p317 = pneg %p135
        $region54: #{tpu_custom_call.1} parent=39 // pred_check_branch
          %319 = sbr.rel (%p317) target = $region56
        $region55: #{tpu_custom_call.1} parent=39 // pred_region
          %320 = dma.done %s313, 256
        $region56: #{tpu_custom_call.1} parent=39 // pred_fallthru
          _
        %p321 = pneg %p57
        %p322 = pneg %p54
        %s323 = sand.u32 %s24, 1
        %s324 = scalar_lea.sflag [#allocation7], %s323
        %s325 = sand.u32 %s70, 1
        %s326 = smul.addr %s325, 48
        %s327 = scalar_lea.vmem [#allocation6], %s326
        %p328 = pneg %p83
        %p329 = pneg %p80
        %s330 = sand.u32 %s24, 1
        %s331 = scalar_lea.sflag [#allocation7], %s330
        %s332 = sand.u32 %s96, 1
        %s333 = smul.addr %s332, 3
        %s334 = scalar_lea.vmem [#allocation8], %s333
        %p335 = pneg %p109
        %p336 = pneg %p106
        %s337 = sand.u32 %s122, 1
        %s338 = scalar_lea.sflag [#allocation10], %s337
        %s339 = sand.u32 %s122, 1
        %s340 = smul.addr %s339, 16
        %s341 = scalar_lea.vmem [#allocation9], %s340
        %p342 = pneg %p135
        %p343 = pneg %p132
        %p344 = pneg %p156
        %p345 = pneg %p153
        %p346 = pneg %p182
        %p347 = pneg %p179
        %s348 = smul.u32 2, %s28
        %s349 = smul.u32 2, %s28
        %p351 = scmp.eq.s32.totalorder %s29, 0
        // Predicated region
        $region57: #{tpu_custom_call.1} parent=39 // pred_check
          %p352 = pneg %p351
        $region58: #{tpu_custom_call.1} parent=39 // pred_check_branch
          %354 = sbr.rel (%p352) target = $region60
        $region59: #{tpu_custom_call.1} parent=39 // pred_region
          %vm355 = vcmask 261120
          %356 = vst.msk [vmem:[#allocation2] sm:$0xff] %vm355, 0.0
          %357 = vst.msk [vmem:[#allocation2 + $0x8] sm:$0xff] %vm355, 0.0
        $region60: #{tpu_custom_call.1} parent=39 // pred_fallthru
          _
        %v358 = vld [vmem:[#allocation3] sm:$0xf]
        %v359 = vld [vmem:[#allocation3 + $0x4] sm:$0xf]
        %v360 = vld [vmem:[%s298] sm:$0xf]
        %v361 = vld [vmem:[%s298 + $0x4] sm:$0xf]
        %v362 = vld [vmem:[%s298 + $0x8] sm:$0xf]
        %v363 = vld [vmem:[%s298 + $0xc] sm:$0xf]
        %v364 = vld [vmem:[%s307] sm:$0x1]
        %v366 = vlaneseq
        %v367 = vshrl.u32 %v366, 7
        %v368 = vsub.s32 0, %v367
        %v369 = vrot.slane %v364, %v368
        %v373 = vunpack.c.l.b16 %v358
        %v374 = vunpack.c.l.b16 %v359
        %v375 = vpack.c.b16 %v374, %v373
        %v380 = vunpack.c.l.b16 %v360
        %v381 = vunpack.c.l.b16 %v361
        %v382 = vunpack.c.l.b16 %v362
        %v383 = vunpack.c.l.b16 %v363
        %v384 = vpack.c.b16 %v381, %v380
        %v385 = vpack.c.b16 %v383, %v382
        %vm388 = vcmask 261120
        %v390 = vsel %vm388, %v375, 0
        %392 = vmatprep.subr.bf16.mxu0 0
        %393 = vmatpush1.bf16.msra.mxu0 %v384
        %394 = vmatprep.subr.bf16.mxu0 0
        %395 = vmatpush1.bf16.msra.mxu0 %v385
        %396 = vmatprep.subr.bf16.mxu0 0
        %397 = vmatpush1.bf16.msra.mxu0 0
        %398 = vmatprep.subr.bf16.mxu0 0
        %399 = vmatpush1.bf16.msra.mxu0 0
        %400 = vmatprep.subr.bf16.mxu0 0
        %401 = vmatpush1.bf16.msra.mxu0 0
        %402 = vmatprep.subr.bf16.mxu0 0
        %403 = vmatpush1.bf16.msra.mxu0 0
        %404 = vmatprep.subr.bf16.mxu0 0
        %405 = vmatpush1.bf16.msra.mxu0 0
        %406 = vmatprep.subr.bf16.mxu0 0
        %407 = vmatpush1.bf16.msra.mxu0 0
        %408 = vmatprep.subr.bf16.mxu0 0
        %409 = vmatpush1.bf16.msra.mxu0 0
        %410 = vmatprep.subr.bf16.mxu0 0
        %411 = vmatpush1.bf16.msra.mxu0 0
        %412 = vmatprep.subr.bf16.mxu0 0
        %413 = vmatpush1.bf16.msra.mxu0 0
        %414 = vmatprep.subr.bf16.mxu0 0
        %415 = vmatpush1.bf16.msra.mxu0 0
        %416 = vmatprep.subr.bf16.mxu0 0
        %417 = vmatpush1.bf16.msra.mxu0 0
        %418 = vmatprep.subr.bf16.mxu0 0
        %419 = vmatpush1.bf16.msra.mxu0 0
        %420 = vmatprep.subr.bf16.mxu0 0
        %421 = vmatpush1.bf16.msra.mxu0 0
        %422 = vmatprep.subr.bf16.mxu0 0
        %423 = vmatpush1.bf16.msra.mxu0 0
        %424 = vmatprep.mubr.bf16.mxu0 0
        %425 = vmatmul.mubr.bf16.gmra.mrb[0].mxu0 %v390
        %v426 = vpop.f32.mrb[0].mxu0
        %v427 = vadd.f32 %v369, %v426
        %v428 = vpop.f32.mrb[0].mxu0
        %v429 = vpop.f32.mrb[0].mxu0
        %v430 = vadd.f32 %v369, %v429
        %v431 = vpop.f32.mrb[0].mxu0
        %432 = vdwg.mxu0
        %v433 = vpack.c.bf16 %v427, %v427
        %v434 = vpack.c.bf16 %v430, %v430
        %s435 = scalar_lea.vmem %s298, 16 [#allocation6]
        %v436 = vld [vmem:[%s435] sm:$0xf]
        %v437 = vld [vmem:[%s435 + $0x4] sm:$0xf]
        %v438 = vld [vmem:[%s435 + $0x8] sm:$0xf]
        %v439 = vld [vmem:[%s435 + $0xc] sm:$0xf]
        %s440 = scalar_lea.vmem %s307, 1 [#allocation8]
        %v441 = vld [vmem:[%s440] sm:$0x1]
        %v443 = vlaneseq
        %v444 = vshrl.u32 %v443, 7
        %v445 = vsub.s32 0, %v444
        %v446 = vrot.slane %v441, %v445
        %v452 = vunpack.c.l.b16 %v436
        %v453 = vunpack.c.l.b16 %v437
        %v454 = vunpack.c.l.b16 %v438
        %v455 = vunpack.c.l.b16 %v439
        %v456 = vpack.c.b16 %v453, %v452
        %v457 = vpack.c.b16 %v455, %v454
        %460 = vmatprep.subr.bf16.mxu0 0
        %461 = vmatpush1.bf16.msra.mxu0 %v456
        %462 = vmatprep.subr.bf16.mxu0 0
        %463 = vmatpush1.bf16.msra.mxu0 %v457
        %464 = vmatprep.subr.bf16.mxu0 0
        %465 = vmatpush1.bf16.msra.mxu0 0
        %466 = vmatprep.subr.bf16.mxu0 0
        %467 = vmatpush1.bf16.msra.mxu0 0
        %468 = vmatprep.subr.bf16.mxu0 0
        %469 = vmatpush1.bf16.msra.mxu0 0
        %470 = vmatprep.subr.bf16.mxu0 0
        %471 = vmatpush1.bf16.msra.mxu0 0
        %472 = vmatprep.subr.bf16.mxu0 0
        %473 = vmatpush1.bf16.msra.mxu0 0
        %474 = vmatprep.subr.bf16.mxu0 0
        %475 = vmatpush1.bf16.msra.mxu0 0
        %476 = vmatprep.subr.bf16.mxu0 0
        %477 = vmatpush1.bf16.msra.mxu0 0
        %478 = vmatprep.subr.bf16.mxu0 0
        %479 = vmatpush1.bf16.msra.mxu0 0
        %480 = vmatprep.subr.bf16.mxu0 0
        %481 = vmatpush1.bf16.msra.mxu0 0
        %482 = vmatprep.subr.bf16.mxu0 0
        %483 = vmatpush1.bf16.msra.mxu0 0
        %484 = vmatprep.subr.bf16.mxu0 0
        %485 = vmatpush1.bf16.msra.mxu0 0
        %486 = vmatprep.subr.bf16.mxu0 0
        %487 = vmatpush1.bf16.msra.mxu0 0
        %488 = vmatprep.subr.bf16.mxu0 0
        %489 = vmatpush1.bf16.msra.mxu0 0
        %490 = vmatprep.subr.bf16.mxu0 0
        %491 = vmatpush1.bf16.msra.mxu0 0
        %492 = vmatprep.mubr.bf16.mxu0 0
        %493 = vmatmul.mubr.bf16.gmra.mrb[0].mxu0 %v390
        %v494 = vpop.f32.mrb[0].mxu0
        %v495 = vadd.f32 %v446, %v494
        %v496 = vpop.f32.mrb[0].mxu0
        %v497 = vpop.f32.mrb[0].mxu0
        %v498 = vadd.f32 %v446, %v497
        %v499 = vpop.f32.mrb[0].mxu0
        %500 = vdwg.mxu0
        %v501 = vpack.c.bf16 %v495, %v495
        %v502 = vpack.c.bf16 %v498, %v498
        %s503 = scalar_lea.vmem %s298, 32 [#allocation6]
        %v504 = vld [vmem:[%s503] sm:$0xf]
        %v505 = vld [vmem:[%s503 + $0x4] sm:$0xf]
        %v506 = vld [vmem:[%s503 + $0x8] sm:$0xf]
        %v507 = vld [vmem:[%s503 + $0xc] sm:$0xf]
        %s508 = scalar_lea.vmem %s307, 2 [#allocation8]
        %v509 = vld [vmem:[%s508] sm:$0x1]
        %v511 = vlaneseq
        %v512 = vshrl.u32 %v511, 7
        %v513 = vsub.s32 0, %v512
        %v514 = vrot.slane %v509, %v513
        %v520 = vunpack.c.l.b16 %v504
        %v521 = vunpack.c.l.b16 %v505
        %v522 = vunpack.c.l.b16 %v506
        %v523 = vunpack.c.l.b16 %v507
        %v524 = vpack.c.b16 %v521, %v520
        %v525 = vpack.c.b16 %v523, %v522
        %528 = vmatprep.subr.bf16.mxu0 0
        %529 = vmatpush1.bf16.msra.mxu0 %v524
        %530 = vmatprep.subr.bf16.mxu0 0
        %531 = vmatpush1.bf16.msra.mxu0 %v525
        %532 = vmatprep.subr.bf16.mxu0 0
        %533 = vmatpush1.bf16.msra.mxu0 0
        %534 = vmatprep.subr.bf16.mxu0 0
        %535 = vmatpush1.bf16.msra.mxu0 0
        %536 = vmatprep.subr.bf16.mxu0 0
        %537 = vmatpush1.bf16.msra.mxu0 0
        %538 = vmatprep.subr.bf16.mxu0 0
        %539 = vmatpush1.bf16.msra.mxu0 0
        %540 = vmatprep.subr.bf16.mxu0 0
        %541 = vmatpush1.bf16.msra.mxu0 0
        %542 = vmatprep.subr.bf16.mxu0 0
        %543 = vmatpush1.bf16.msra.mxu0 0
        %544 = vmatprep.subr.bf16.mxu0 0
        %545 = vmatpush1.bf16.msra.mxu0 0
        %546 = vmatprep.subr.bf16.mxu0 0
        %547 = vmatpush1.bf16.msra.mxu0 0
        %548 = vmatprep.subr.bf16.mxu0 0
        %549 = vmatpush1.bf16.msra.mxu0 0
        %550 = vmatprep.subr.bf16.mxu0 0
        %551 = vmatpush1.bf16.msra.mxu0 0
        %552 = vmatprep.subr.bf16.mxu0 0
        %553 = vmatpush1.bf16.msra.mxu0 0
        %554 = vmatprep.subr.bf16.mxu0 0
        %555 = vmatpush1.bf16.msra.mxu0 0
        %556 = vmatprep.subr.bf16.mxu0 0
        %557 = vmatpush1.bf16.msra.mxu0 0
        %558 = vmatprep.subr.bf16.mxu0 0
        %559 = vmatpush1.bf16.msra.mxu0 0
        %560 = vmatprep.mubr.bf16.mxu0 0
        %561 = vmatmul.mubr.bf16.gmra.mrb[0].mxu0 %v390
        %v562 = vpop.f32.mrb[0].mxu0
        %v563 = vadd.f32 %v514, %v562
        %v564 = vpop.f32.mrb[0].mxu0
        %v565 = vpop.f32.mrb[0].mxu0
        %v566 = vadd.f32 %v514, %v565
        %v567 = vpop.f32.mrb[0].mxu0
        %568 = vdwg.mxu0
        %v569 = vpack.c.bf16 %v563, %v563
        %v570 = vpack.c.bf16 %v566, %v566
        %v572 = vsel %vm388, %v433, 0
        %v575 = vsel %vm388, %v501, 0
        %577 = vmatprep.subr.bf16.mxu0 0
        %578 = vmatpush1.bf16.xpose.msra.mxu0 %v575
        %579 = vmatprep.subr.bf16.mxu0 0
        %580 = vmatpush1.bf16.xpose.msra.mxu0 0
        %581 = vmatprep.subr.bf16.mxu0 0
        %582 = vmatpush1.bf16.xpose.msra.mxu0 0
        %583 = vmatprep.subr.bf16.mxu0 0
        %584 = vmatpush1.bf16.xpose.msra.mxu0 0
        %585 = vmatprep.subr.bf16.mxu0 0
        %586 = vmatpush1.bf16.xpose.msra.mxu0 0
        %587 = vmatprep.subr.bf16.mxu0 0
        %588 = vmatpush1.bf16.xpose.msra.mxu0 0
        %589 = vmatprep.subr.bf16.mxu0 0
        %590 = vmatpush1.bf16.xpose.msra.mxu0 0
        %591 = vmatprep.subr.bf16.mxu0 0
        %592 = vmatpush1.bf16.xpose.msra.mxu0 0
        %593 = vmatprep.subr.bf16.mxu0 0
        %594 = vmatpush1.bf16.xpose.msra.mxu0 0
        %595 = vmatprep.subr.bf16.mxu0 0
        %596 = vmatpush1.bf16.xpose.msra.mxu0 0
        %597 = vmatprep.subr.bf16.mxu0 0
        %598 = vmatpush1.bf16.xpose.msra.mxu0 0
        %599 = vmatprep.subr.bf16.mxu0 0
        %600 = vmatpush1.bf16.xpose.msra.mxu0 0
        %601 = vmatprep.subr.bf16.mxu0 0
        %602 = vmatpush1.bf16.xpose.msra.mxu0 0
        %603 = vmatprep.subr.bf16.mxu0 0
        %604 = vmatpush1.bf16.xpose.msra.mxu0 0
        %605 = vmatprep.subr.bf16.mxu0 0
        %606 = vmatpush1.bf16.xpose.msra.mxu0 0
        %607 = vmatprep.subr.bf16.mxu0 0
        %608 = vmatpush1.bf16.xpose.msra.mxu0 0
        %609 = vmatprep.mubr.bf16.mxu0 0
        %610 = vmatmul.mubr.bf16.gmra.mrb[0].mxu0 %v572
        %v611 = vpop.f32.mrb[0].mxu0
        %v612 = vadd.f32 0.0, %v611
        %v613 = vpop.f32.mrb[0].mxu0
        %v614 = vpop.f32.mrb[0].mxu0
        %v615 = vpop.f32.mrb[0].mxu0
        %616 = vdwg.mxu0
        %v618 = vsel %vm388, %v434, 0
        %v621 = vsel %vm388, %v502, 0
        %623 = vmatprep.subr.bf16.mxu0 0
        %624 = vmatpush1.bf16.xpose.msra.mxu0 %v621
        %625 = vmatprep.subr.bf16.mxu0 0
        %626 = vmatpush1.bf16.xpose.msra.mxu0 0
        %627 = vmatprep.subr.bf16.mxu0 0
        %628 = vmatpush1.bf16.xpose.msra.mxu0 0
        %629 = vmatprep.subr.bf16.mxu0 0
        %630 = vmatpush1.bf16.xpose.msra.mxu0 0
        %631 = vmatprep.subr.bf16.mxu0 0
        %632 = vmatpush1.bf16.xpose.msra.mxu0 0
        %633 = vmatprep.subr.bf16.mxu0 0
        %634 = vmatpush1.bf16.xpose.msra.mxu0 0
        %635 = vmatprep.subr.bf16.mxu0 0
        %636 = vmatpush1.bf16.xpose.msra.mxu0 0
        %637 = vmatprep.subr.bf16.mxu0 0
        %638 = vmatpush1.bf16.xpose.msra.mxu0 0
        %639 = vmatprep.subr.bf16.mxu0 0
        %640 = vmatpush1.bf16.xpose.msra.mxu0 0
        %641 = vmatprep.subr.bf16.mxu0 0
        %642 = vmatpush1.bf16.xpose.msra.mxu0 0
        %643 = vmatprep.subr.bf16.mxu0 0
        %644 = vmatpush1.bf16.xpose.msra.mxu0 0
        %645 = vmatprep.subr.bf16.mxu0 0
        %646 = vmatpush1.bf16.xpose.msra.mxu0 0
        %647 = vmatprep.subr.bf16.mxu0 0
        %648 = vmatpush1.bf16.xpose.msra.mxu0 0
        %649 = vmatprep.subr.bf16.mxu0 0
        %650 = vmatpush1.bf16.xpose.msra.mxu0 0
        %651 = vmatprep.subr.bf16.mxu0 0
        %652 = vmatpush1.bf16.xpose.msra.mxu0 0
        %653 = vmatprep.subr.bf16.mxu0 0
        %654 = vmatpush1.bf16.xpose.msra.mxu0 0
        %655 = vmatprep.mubr.bf16.mxu0 0
        %656 = vmatmul.mubr.bf16.gmra.mrb[0].mxu0 %v618
        %v657 = vpop.f32.mrb[0].mxu0
        %v658 = vadd.f32 0.0, %v657
        %v659 = vpop.f32.mrb[0].mxu0
        %v660 = vpop.f32.mrb[0].mxu0
        %v661 = vpop.f32.mrb[0].mxu0
        %662 = vdwg.mxu0
        %vm663 = vcmask 64512
        %v664 = vsel %vm663, %v612, -inf
        %665 = vmax.xlane.f32.xlu0 %v664
        %v666 = vpop.xlane.xlu0 %665
        %v667 = vsel %vm663, %v658, -inf
        %668 = vmax.xlane.f32.xlu0 %v667
        %v669 = vpop.xlane.xlu0 %668
        %v670 = vsub.f32 %v612, %v666
        %v671 = vsub.f32 %v658, %v669
        %v672 = vmul.f32 %v670, 1.442695
        %v673 = vpow.pop %v672
        %v674 = vmul.f32 %v671, 1.442695
        %v675 = vpow.pop %v674
        %v676 = vsel %vm663, %v673, 0.0
        %677 = vadd.xlane.f32.xlu0 %v676
        %v678 = vpop.xlane.xlu0 %677
        %v679 = vsel %vm663, %v675, 0.0
        %680 = vadd.xlane.f32.xlu0 %v679
        %v681 = vpop.xlane.xlu0 %680
        %v682 = vrcp.pop %v678
        %v683 = vrcp.pop %v681
        %v684 = vmul.f32 %v673, %v682
        %v685 = vmul.f32 %v675, %v683
        %v686 = vpack.c.bf16 %v684, %v684
        %v687 = vpack.c.bf16 %v685, %v685
        %v689 = vsel %vm663, %v686, 0
        %vm691 = vcmask 1043456
        %v693 = vsel %vm691, %v569, 0
        %695 = vmatprep.subr.bf16.mxu0 0
        %696 = vmatpush1.bf16.msra.mxu0 %v693
        %697 = vmatprep.subr.bf16.mxu0 0
        %698 = vmatpush1.bf16.msra.mxu0 0
        %699 = vmatprep.subr.bf16.mxu0 0
        %700 = vmatpush1.bf16.msra.mxu0 0
        %701 = vmatprep.subr.bf16.mxu0 0
        %702 = vmatpush1.bf16.msra.mxu0 0
        %703 = vmatprep.subr.bf16.mxu0 0
        %704 = vmatpush1.bf16.msra.mxu0 0
        %705 = vmatprep.subr.bf16.mxu0 0
        %706 = vmatpush1.bf16.msra.mxu0 0
        %707 = vmatprep.subr.bf16.mxu0 0
        %708 = vmatpush1.bf16.msra.mxu0 0
        %709 = vmatprep.subr.bf16.mxu0 0
        %710 = vmatpush1.bf16.msra.mxu0 0
        %711 = vmatprep.subr.bf16.mxu0 0
        %712 = vmatpush1.bf16.msra.mxu0 0
        %713 = vmatprep.subr.bf16.mxu0 0
        %714 = vmatpush1.bf16.msra.mxu0 0
        %715 = vmatprep.subr.bf16.mxu0 0
        %716 = vmatpush1.bf16.msra.mxu0 0
        %717 = vmatprep.subr.bf16.mxu0 0
        %718 = vmatpush1.bf16.msra.mxu0 0
        %719 = vmatprep.subr.bf16.mxu0 0
        %720 = vmatpush1.bf16.msra.mxu0 0
        %721 = vmatprep.subr.bf16.mxu0 0
        %722 = vmatpush1.bf16.msra.mxu0 0
        %723 = vmatprep.subr.bf16.mxu0 0
        %724 = vmatpush1.bf16.msra.mxu0 0
        %725 = vmatprep.subr.bf16.mxu0 0
        %726 = vmatpush1.bf16.msra.mxu0 0
        %727 = vmatprep.mubr.bf16.mxu0 0
        %728 = vmatmul.mubr.bf16.gmra.mrb[0].mxu0 %v689
        %v729 = vpop.f32.mrb[0].mxu0
        %v730 = vadd.f32 0.0, %v729
        %v731 = vpop.f32.mrb[0].mxu0
        %v732 = vpop.f32.mrb[0].mxu0
        %v733 = vpop.f32.mrb[0].mxu0
        %734 = vdwg.mxu0
        %v736 = vsel %vm663, %v687, 0
        %v739 = vsel %vm691, %v570, 0
        %741 = vmatprep.subr.bf16.mxu0 0
        %742 = vmatpush1.bf16.msra.mxu0 %v739
        %743 = vmatprep.subr.bf16.mxu0 0
        %744 = vmatpush1.bf16.msra.mxu0 0
        %745 = vmatprep.subr.bf16.mxu0 0
        %746 = vmatpush1.bf16.msra.mxu0 0
        %747 = vmatprep.subr.bf16.mxu0 0
        %748 = vmatpush1.bf16.msra.mxu0 0
        %749 = vmatprep.subr.bf16.mxu0 0
        %750 = vmatpush1.bf16.msra.mxu0 0
        %751 = vmatprep.subr.bf16.mxu0 0
        %752 = vmatpush1.bf16.msra.mxu0 0
        %753 = vmatprep.subr.bf16.mxu0 0
        %754 = vmatpush1.bf16.msra.mxu0 0
        %755 = vmatprep.subr.bf16.mxu0 0
        %756 = vmatpush1.bf16.msra.mxu0 0
        %757 = vmatprep.subr.bf16.mxu0 0
        %758 = vmatpush1.bf16.msra.mxu0 0
        %759 = vmatprep.subr.bf16.mxu0 0
        %760 = vmatpush1.bf16.msra.mxu0 0
        %761 = vmatprep.subr.bf16.mxu0 0
        %762 = vmatpush1.bf16.msra.mxu0 0
        %763 = vmatprep.subr.bf16.mxu0 0
        %764 = vmatpush1.bf16.msra.mxu0 0
        %765 = vmatprep.subr.bf16.mxu0 0
        %766 = vmatpush1.bf16.msra.mxu0 0
        %767 = vmatprep.subr.bf16.mxu0 0
        %768 = vmatpush1.bf16.msra.mxu0 0
        %769 = vmatprep.subr.bf16.mxu0 0
        %770 = vmatpush1.bf16.msra.mxu0 0
        %771 = vmatprep.subr.bf16.mxu0 0
        %772 = vmatpush1.bf16.msra.mxu0 0
        %773 = vmatprep.mubr.bf16.mxu0 0
        %774 = vmatmul.mubr.bf16.gmra.mrb[0].mxu0 %v736
        %v775 = vpop.f32.mrb[0].mxu0
        %v776 = vadd.f32 0.0, %v775
        %v777 = vpop.f32.mrb[0].mxu0
        %v778 = vpop.f32.mrb[0].mxu0
        %v779 = vpop.f32.mrb[0].mxu0
        %780 = vdwg.mxu0
        %v781 = vld [vmem:[#allocation2] sm:$0xff]
        %v782 = vld [vmem:[#allocation2 + $0x8] sm:$0xff]
        %v783 = vpack.c.bf16 %v730, %v730
        %v784 = vpack.c.bf16 %v776, %v776
        %v785 = vld [vmem:[%s316] sm:$0xf]
        %v786 = vld [vmem:[%s316 + $0x4] sm:$0xf]
        %v787 = vld [vmem:[%s316 + $0x8] sm:$0xf]
        %v788 = vld [vmem:[%s316 + $0xc] sm:$0xf]
        %v791 = vunpack.c.l.b16 %v783
        %v792 = vunpack.c.l.b16 %v784
        %v793 = vpack.c.b16 %v792, %v791
        %v798 = vunpack.c.l.b16 %v785
        %v799 = vunpack.c.l.b16 %v786
        %v800 = vunpack.c.l.b16 %v787
        %v801 = vunpack.c.l.b16 %v788
        %v802 = vpack.c.b16 %v799, %v798
        %v803 = vpack.c.b16 %v801, %v800
        %v807 = vsel %vm388, %v793, 0
        %809 = vmatprep.subr.bf16.mxu0 0
        %810 = vmatpush1.bf16.msra.mxu0 %v802
        %811 = vmatprep.subr.bf16.mxu0 0
        %812 = vmatpush1.bf16.msra.mxu0 %v803
        %813 = vmatprep.subr.bf16.mxu0 0
        %814 = vmatpush1.bf16.msra.mxu0 0
        %815 = vmatprep.subr.bf16.mxu0 0
        %816 = vmatpush1.bf16.msra.mxu0 0
        %817 = vmatprep.subr.bf16.mxu0 0
        %818 = vmatpush1.bf16.msra.mxu0 0
        %819 = vmatprep.subr.bf16.mxu0 0
        %820 = vmatpush1.bf16.msra.mxu0 0
        %821 = vmatprep.subr.bf16.mxu0 0
        %822 = vmatpush1.bf16.msra.mxu0 0
        %823 = vmatprep.subr.bf16.mxu0 0
        %824 = vmatpush1.bf16.msra.mxu0 0
        %825 = vmatprep.subr.bf16.mxu0 0
        %826 = vmatpush1.bf16.msra.mxu0 0
        %827 = vmatprep.subr.bf16.mxu0 0
        %828 = vmatpush1.bf16.msra.mxu0 0
        %829 = vmatprep.subr.bf16.mxu0 0
        %830 = vmatpush1.bf16.msra.mxu0 0
        %831 = vmatprep.subr.bf16.mxu0 0
        %832 = vmatpush1.bf16.msra.mxu0 0
        %833 = vmatprep.subr.bf16.mxu0 0
        %834 = vmatpush1.bf16.msra.mxu0 0
        %835 = vmatprep.subr.bf16.mxu0 0
        %836 = vmatpush1.bf16.msra.mxu0 0
        %837 = vmatprep.subr.bf16.mxu0 0
        %838 = vmatpush1.bf16.msra.mxu0 0
        %839 = vmatprep.subr.bf16.mxu0 0
        %840 = vmatpush1.bf16.msra.mxu0 0
        %841 = vmatprep.mubr.bf16.mxu0 0
        %842 = vmatmul.mubr.bf16.gmra.mrb[0].mxu0 %v807
        %v843 = vpop.f32.mrb[0].mxu0
        %v844 = vadd.f32 0.0, %v843
        %v845 = vpop.f32.mrb[0].mxu0
        %v846 = vpop.f32.mrb[0].mxu0
        %v847 = vadd.f32 0.0, %v846
        %v848 = vpop.f32.mrb[0].mxu0
        %849 = vdwg.mxu0
        %v850 = vadd.f32 %v781, %v844
        %v851 = vadd.f32 %v782, %v847
        %852 = vst.msk [vmem:[#allocation2] sm:$0xff] %vm388, %v850
        %853 = vst.msk [vmem:[#allocation2 + $0x8] sm:$0xff] %vm388, %v851
        %p854 = scmp.eq.s32.totalorder %s29, 3
        // Predicated region
        $region61: #{tpu_custom_call.1} parent=39 // pred_check
          %p855 = pneg %p854
        $region62: #{tpu_custom_call.1} parent=39 // pred_check_branch
          %857 = sbr.rel (%p855) target = $region64
        $region63: #{tpu_custom_call.1} parent=39 // pred_region
          %v858 = vld [vmem:[#allocation2] sm:$0xff]
          %v859 = vld [vmem:[#allocation2 + $0x8] sm:$0xff]
          %v860 = vld [vmem:[%s4] sm:$0x1]
          %v862 = vlaneseq
          %v863 = vshrl.u32 %v862, 7
          %v864 = vsub.s32 0, %v863
          %v865 = vrot.slane %v860, %v864
          %v867 = vadd.f32 %v858, %v865
          %v868 = vadd.f32 %v859, %v865
          %869 = vst.msk [vmem:[#allocation11] sm:$0xff] %vm388, %v867
          %870 = vst.msk [vmem:[#allocation11 + $0x8] sm:$0xff] %vm388, %v868
        $region64: #{tpu_custom_call.1} parent=39 // pred_fallthru
          _
        // Predicated region
        $region65: #{tpu_custom_call.1} parent=39 // pred_check
          %p871 = pneg %p179
        $region66: #{tpu_custom_call.1} parent=39 // pred_check_branch
          %873 = sbr.rel (%p871) target = $region68
        $region67: #{tpu_custom_call.1} parent=39 // pred_region
          %s874 = smul.u32 2, %s28
          %s876 = ssub.s32 256, 256
          %877 = vsyncadd [#allocation5], %s876
          %s878 = smul.addr %s874, 128
          %s879 = scalar_lea.hbm %s5, %s878
          %s880 = sshll.u32 [#allocation11], 4
          %s881 = int_to_ptr.vmem [resolvable:$true] %s880
          %886 = dma.vmem_to_hbm [thread:$0]  %s881, 256, %s879, [#allocation5], 128, 128, 8
        $region68: #{tpu_custom_call.1} parent=39 // pred_fallthru
          _
        // Predicated region
        $region69: #{tpu_custom_call.1} parent=39 // pred_check
          %p887 = pneg %p179
        $region70: #{tpu_custom_call.1} parent=39 // pred_check_branch
          %889 = sbr.rel (%p887) target = $region72
        $region71: #{tpu_custom_call.1} parent=39 // pred_region
          %890 = dma.done [#allocation5], 256
        $region72: #{tpu_custom_call.1} parent=39 // pred_fallthru
          _
      $region40: #{tpu_custom_call.1} parent=5 // pred_fallthru
        _
      %p891 = scmp.le.s32.totalorder 2, %s19
      // Predicated region
      $region73: #{tpu_custom_call.1} parent=5 // pred_check
        %p892 = pneg %p891
      $region74: #{tpu_custom_call.1} parent=5 // pred_check_branch
        %894 = sbr.rel (%p892) target = $region76
      $region75: #{tpu_custom_call.1} parent=5 // pred_region
        %s895 = ssub.s32 %s19, 2
      $region76: #{tpu_custom_call.1} parent=5 // pred_fallthru
        _
    $region6: #{tpu_custom_call.1} parent=1 // loop_footer
      %s23 = sadd.s32 1, %s19
    $region7: #{tpu_custom_call.1} parent=1 // loop_footer_branch
      %18 = sbr.rel target = $region3
    $region8: #{tpu_custom_call.1} parent=1 // loop_exit
      _
    %896 = vsyncpa [#allocation4], 1
    %s897 = scalar_lea.sflag [#allocation4], 1
    %898 = vsyncpa %s897, 1
    %899 = vsyncpa [#allocation7], 1
    %s900 = scalar_lea.sflag [#allocation7], 1
    %901 = vsyncpa %s900, 1
    %902 = vsyncpa [#allocation10], 1
    %s903 = scalar_lea.sflag [#allocation10], 1
    %904 = vsyncpa %s903, 1
    %905 = vsyncpa [#allocation5], 1
    %s906 = scalar_lea.sflag [#allocation5], 1
    %907 = vsyncpa %s906, 1

</llo_original>
